<compile_context>
chip_gen: v6e
topology: v6e:2x2x1
jax: 0.10.0
libtpu: 0.0.40
codegen_flags: <defaults>
</compile_context>

<pallas_src>
import functools
import math

import jax
import jax.numpy as jnp
from jax.experimental import pallas as pl
from jax.experimental.pallas import tpu as pltpu


_MiB = 1024 * 1024


def _vmem_limit_bytes():
    """Scoped-VMEM budget per generation: ~3/4 of physical, capped at 96 MiB
    (v5e/v6e: 128 MiB physical -> 96 MiB; v7x: 64 MiB physical -> 48 MiB).
    Conservative 32 MiB fallback if the query is unavailable."""
    try:
        cap = int(pltpu.get_tpu_info().vmem_capacity_bytes)
    except Exception:
        return 32 * _MiB
    return int(min((3 * cap) // 4, 96 * _MiB))


# ----------------------------------------------------------------------------
# Pass 1: fused stream over x -> per-graph pooled sums + Linear1 BN statistics
# ----------------------------------------------------------------------------
def _stream_pool_stats_kernel(starts_ref, ends_ref, x_ref, w1_ref,
                              stats_ref, pooled_ref):
    i = pl.program_id(0)          # row-tile index   ("parallel")
    j = pl.program_id(1)          # inner-tile index ("arbitrary")

    x = x_ref[...]                                             # [TR, IN] f32

    # Per-protein partial sums for this row tile: one-hot [B_pad, TR] matmul
    # on the MXU (cost O(1) in num_graphs), f32 accumulation.  Done once per
    # row tile (j == 0); the pooled output block is simply revisited (never
    # rewritten) for j > 0 and flushed when the row tile changes.
    @pl.when(j == 0)
    def _():
        tr = x.shape[0]
        b_pad = starts_ref.shape[0]
        rows = jax.lax.broadcasted_iota(jnp.int32, (b_pad, tr), 1) + i * tr
        onehot = ((rows >= starts_ref[...]) & (rows < ends_ref[...])
                  ).astype(jnp.float32)                        # [B_pad, TR]
        pooled_ref[0] = jnp.dot(onehot, x, preferred_element_type=jnp.float32)

    # Linear-1 partial (bias-free: the Linear bias cancels inside BatchNorm)
    # and one-pass per-feature sum / sum-of-squares for this (row, inner)
    # tile.  Padded rows of x are exact zeros -> they contribute nothing.
    z = jnp.dot(x.astype(jnp.bfloat16), w1_ref[...],
                preferred_element_type=jnp.float32)            # [TR, TI]
    s = jnp.sum(z, axis=0, keepdims=True)                      # [1, TI]
    sq = jnp.sum(z * z, axis=0, keepdims=True)                 # [1, TI]
    stats_ref[0] = jnp.concatenate(
        [s, sq, jnp.zeros((6, z.shape[1]), jnp.float32)], axis=0)


def residue_pool_and_stats(starts, ends, x, w1, *, tile_rows, tile_inner,
                           vmem_limit):
    n_pad, in_dim = x.shape
    in_dim2, inner = w1.shape
    assert in_dim == in_dim2
    b_pad = starts.shape[0]
    n_rt = n_pad // tile_rows
    n_it = inner // tile_inner

    return pl.pallas_call(
        _stream_pool_stats_kernel,
        grid=(n_rt, n_it),
        in_specs=[
            pl.BlockSpec((b_pad, 1), lambda i, j: (0, 0)),           # starts
            pl.BlockSpec((b_pad, 1), lambda i, j: (0, 0)),           # ends
            pl.BlockSpec((tile_rows, in_dim), lambda i, j: (i, 0)),  # x
            pl.BlockSpec((in_dim, tile_inner), lambda i, j: (0, j)),  # w1
        ],
        out_specs=(
            pl.BlockSpec((1, 8, tile_inner), lambda i, j: (i, 0, j)),    # stats
            pl.BlockSpec((1, b_pad, in_dim), lambda i, j: (i, 0, 0)),    # pooled
        ),
        out_shape=(
            jax.ShapeDtypeStruct((n_rt, 8, inner), jnp.float32),
            jax.ShapeDtypeStruct((n_rt, b_pad, in_dim), jnp.float32),
        ),
        compiler_params=pltpu.CompilerParams(
            dimension_semantics=("parallel", "arbitrary"),
            vmem_limit_bytes=vmem_limit,
        ),
    )(starts, ends, x, w1)


# ----------------------------------------------------------------------------
# Pass 2: residue projector — BN (folded scale/shift) + ReLU + Linear2,
#         rows "parallel" x inner "arbitrary", accumulating into o_ref.
# ----------------------------------------------------------------------------
def _residue_project_kernel(x_ref, w1_ref, aff_ref, w2_ref, b2_ref, o_ref):
    j = pl.program_id(1)

    z = jnp.dot(x_ref[...].astype(jnp.bfloat16), w1_ref[...],
                preferred_element_type=jnp.float32)            # [TR, TI]
    scale = aff_ref[0:1, :]                                    # [1, TI]
    shift = aff_ref[1:2, :]                                    # [1, TI]
    hn = jnp.maximum(z * scale + shift, 0.0)                   # BN + ReLU

    contrib = jnp.dot(hn.astype(jnp.bfloat16), w2_ref[...],
                      preferred_element_type=jnp.float32)      # [TR, OUT]

    @pl.when(j == 0)
    def _():
        o_ref[...] = contrib + b2_ref[...]

    @pl.when(j > 0)
    def _():
        o_ref[...] += contrib


def residue_project(x, w1, affine, w2, b2, *, tile_rows, tile_inner,
                    vmem_limit):
    n_pad, in_dim = x.shape
    inner, out_dim = w2.shape
    n_rt = n_pad // tile_rows
    n_it = inner // tile_inner

    return pl.pallas_call(
        _residue_project_kernel,
        grid=(n_rt, n_it),
        in_specs=[
            pl.BlockSpec((tile_rows, in_dim), lambda i, j: (i, 0)),    # x
            pl.BlockSpec((in_dim, tile_inner), lambda i, j: (0, j)),   # w1
            pl.BlockSpec((8, tile_inner), lambda i, j: (0, j)),        # scale/shift
            pl.BlockSpec((tile_inner, out_dim), lambda i, j: (j, 0)),  # w2
            pl.BlockSpec((1, out_dim), lambda i, j: (0, 0)),           # b2
        ],
        out_specs=pl.BlockSpec((tile_rows, out_dim), lambda i, j: (i, 0)),
        out_shape=jax.ShapeDtypeStruct((n_pad, out_dim), jnp.float32),
        compiler_params=pltpu.CompilerParams(
            dimension_semantics=("parallel", "arbitrary"),
            vmem_limit_bytes=vmem_limit,
        ),
    )(x, w1, affine, w2, b2)


# ----------------------------------------------------------------------------
# Protein head: MoBYMLP on the pooled means (tiny — its own pallas_call so its
# weights never occupy VMEM during the streaming pass).
# ----------------------------------------------------------------------------
def _protein_head_kernel(m_ref, w1_ref, b1_ref, g_ref, be_ref, w2_ref, b2_ref,
                         o_ref, *, num_graphs):
    h = jnp.dot(m_ref[...].astype(jnp.bfloat16), w1_ref[...],
                preferred_element_type=jnp.float32) + b1_ref[...]   # [Bp, INNER]
    b_pad = h.shape[0]
    # BatchNorm1d train-mode stats over the real graph rows only, two-pass
    # (h-mu)^2 form (stable when stats are over only a few rows).
    maskf = (jax.lax.broadcasted_iota(jnp.int32, (b_pad, 1), 0) < num_graphs
             ).astype(jnp.float32)
    inv_b = 1.0 / num_graphs
    mu = jnp.sum(h * maskf, axis=0, keepdims=True) * inv_b
    d = (h - mu) * maskf
    var = jnp.sum(d * d, axis=0, keepdims=True) * inv_b
    hn = (h - mu) * jax.lax.rsqrt(var + 1e-5) * g_ref[...] + be_ref[...]
    hn = jnp.maximum(hn, 0.0)                                   # ReLU
    o_ref[...] = (jnp.dot(hn.astype(jnp.bfloat16), w2_ref[...],
                          preferred_element_type=jnp.float32)
                  + b2_ref[...]).astype(o_ref.dtype)


def protein_head(means, p, *, num_graphs, vmem_limit):
    b_pad = means.shape[0]
    out_dim = p["w2"].shape[1]
    kernel = functools.partial(_protein_head_kernel, num_graphs=num_graphs)
    return pl.pallas_call(
        kernel,
        out_shape=jax.ShapeDtypeStruct((b_pad, out_dim), jnp.float32),
        compiler_params=pltpu.CompilerParams(vmem_limit_bytes=vmem_limit),
    )(means, p["w1"], p["b1"], p["gamma"], p["beta"], p["w2"], p["b2"])


# ----------------------------------------------------------------------------
# Parameter init (PyTorch nn.Linear / nn.BatchNorm1d defaults); weights bf16
# ----------------------------------------------------------------------------
def init_moby_mlp_params(key, in_dim, inner_dim, out_dim):
    k1, k2, k3, k4 = jax.random.split(key, 4)
    lim1 = 1.0 / math.sqrt(in_dim)
    lim2 = 1.0 / math.sqrt(inner_dim)
    return dict(
        w1=jax.random.uniform(k1, (in_dim, inner_dim), jnp.float32,
                              -lim1, lim1).astype(jnp.bfloat16),
        b1=jax.random.uniform(k2, (1, inner_dim), jnp.float32, -lim1, lim1),
        gamma=jnp.ones((1, inner_dim), jnp.float32),
        beta=jnp.zeros((1, inner_dim), jnp.float32),
        w2=jax.random.uniform(k3, (inner_dim, out_dim), jnp.float32,
                              -lim2, lim2).astype(jnp.bfloat16),
        b2=jax.random.uniform(k4, (1, out_dim), jnp.float32, -lim2, lim2),
    )


# ----------------------------------------------------------------------------
# Forward: pooled protein features + residue features through MoBYMLP heads
# ----------------------------------------------------------------------------
def esm2_contrastive_forward(residue_feature_embedding, batch_ids, num_graphs,
                             prot_params, res_params, *,
                             tile_rows=None, tile_inner=None):
    n, in_dim = residue_feature_embedding.shape
    inner = res_params["w1"].shape[1]
    out_dim = res_params["w2"].shape[1]

    vmem_limit = _vmem_limit_bytes()
    if tile_rows is None:                      # bigger tiles on v5e/v6e
        tile_rows = 512 if vmem_limit >= 64 * _MiB else 256
    if tile_inner is None:
        tile_inner = 1024 if vmem_limit >= 64 * _MiB else 512
    tile_inner = min(tile_inner, inner)

    assert in_dim % 128 == 0 and out_dim % 128 == 0
    assert tile_rows % 8 == 0
    assert tile_inner % 128 == 0 and inner % tile_inner == 0

    # Zero-pad rows so padded rows contribute exactly zero to all partials.
    n_pad = ((n + tile_rows - 1) // tile_rows) * tile_rows
    x = residue_feature_embedding.astype(jnp.float32)
    if n_pad != n:
        x = jnp.pad(x, ((0, n_pad - n), (0, 0)))

    # Segment [start, end) boundaries (graph.batch is sorted); padded graph
    # slots get empty ranges.
    # TODO(synk): an empty real graph (count==0) yields a zero mean row that
    # still enters the protein BatchNorm stats (PyTorch would produce NaN).
    b_pad = max(8, ((num_graphs + 7) // 8) * 8)
    counts = jnp.bincount(batch_ids, length=num_graphs).astype(jnp.int32)
    starts_g = (jnp.cumsum(counts) - counts).astype(jnp.int32)
    ends_g = (starts_g + counts).astype(jnp.int32)
    pad_seg = jnp.full((b_pad - num_graphs,), n_pad, dtype=jnp.int32)
    starts = jnp.concatenate([starts_g, pad_seg]).reshape(b_pad, 1)
    ends = jnp.concatenate([ends_g, pad_seg]).reshape(b_pad, 1)

    # ---- Pass 1: single stream over x ---------------------------------------
    stats_p, pooled_p = residue_pool_and_stats(
        starts, ends, x, res_params["w1"],
        tile_rows=tile_rows, tile_inner=tile_inner, vmem_limit=vmem_limit)

    # Residue BatchNorm folded into a per-feature scale / shift (tiny JAX ops).
    stats = jnp.sum(stats_p, axis=0)                       # [8, inner]
    inv_n = 1.0 / n
    mu = stats[0:1] * inv_n
    var = jnp.maximum(stats[1:2] * inv_n - mu * mu, 0.0)
    scale = res_params["gamma"] * jax.lax.rsqrt(var + 1e-5)
    shift = res_params["beta"] - mu * scale                # Linear-1 bias cancels
    affine = jnp.concatenate(
        [scale, shift, jnp.zeros((6, inner), jnp.float32)], axis=0)  # [8, inner]

    # Pooled means (f32) -> protein MoBYMLP head.
    pooled = jnp.sum(pooled_p, axis=0)                     # [b_pad, in_dim]
    cnt = jnp.maximum(counts, 1).astype(jnp.float32)
    cnt = jnp.concatenate([cnt, jnp.ones((b_pad - num_graphs,), jnp.float32)])
    means = pooled / cnt[:, None]
    graph_feature = protein_head(means, prot_params, num_graphs=num_graphs,
                                 vmem_limit=vmem_limit)[:num_graphs]

    # ---- Pass 2: normalize + Linear2, accumulate into the output block ------
    residue_feature = residue_project(
        x, res_params["w1"], affine, res_params["w2"], res_params["b2"],
        tile_rows=tile_rows, tile_inner=tile_inner, vmem_limit=vmem_limit)[:n]

    return graph_feature, residue_feature


if __name__ == "__main__":
    NUM_GRAPHS = 2
    NODE_COUNTS = (60, 40)            # residues per protein (graph.batch bincount)
    N = sum(NODE_COUNTS)              # 100 residues total
    DIM_MLP = 128                     # small analog of ESM2's 1280
    RES_INNER, RES_OUT = 256, 128     # small analog of the 4096 / 256 projector
    PROT_INNER, PROT_OUT = 256, 128

    key = jax.random.PRNGKey(0)
    k_emb, k_res, k_prot = jax.random.split(key, 3)

    # Residue embedding the frozen ESM2 backbone would have produced (see TODO).
    residue_feature_embedding = jax.random.normal(k_emb, (N, DIM_MLP), jnp.float32)
    batch_ids = jnp.concatenate([
        jnp.zeros((NODE_COUNTS[0],), jnp.int32),
        jnp.ones((NODE_COUNTS[1],), jnp.int32)])

    prot_params = init_moby_mlp_params(k_prot, DIM_MLP, PROT_INNER, PROT_OUT)
    res_params = init_moby_mlp_params(k_res, DIM_MLP, RES_INNER, RES_OUT)

    graph_feature, residue_feature = esm2_contrastive_forward(
        residue_feature_embedding, batch_ids, NUM_GRAPHS,
        prot_params, res_params, tile_rows=32, tile_inner=128)
    jax.block_until_ready((graph_feature, residue_feature))

    assert graph_feature.shape == (NUM_GRAPHS, PROT_OUT)
    assert residue_feature.shape == (N, RES_OUT)
    assert bool(jnp.all(jnp.isfinite(graph_feature)))
    assert bool(jnp.all(jnp.isfinite(residue_feature)))

    # Pure-JAX reference (f32) — loose tolerance since the kernels use bf16
    # matmuls, and BatchNorm over only 2 pooled rows is ill-conditioned.
    def _moby_ref(x, p):
        h = x @ p["w1"].astype(jnp.float32) + p["b1"]
        mu = jnp.mean(h, axis=0, keepdims=True)
        var = jnp.mean((h - mu) ** 2, axis=0, keepdims=True)
        h = (h - mu) * jax.lax.rsqrt(var + 1e-5) * p["gamma"] + p["beta"]
        h = jnp.maximum(h, 0.0)
        return h @ p["w2"].astype(jnp.float32) + p["b2"]

    seg = jax.nn.one_hot(batch_ids, NUM_GRAPHS, dtype=jnp.float32)   # [N, B]
    pooled_ref = (seg.T @ residue_feature_embedding) / jnp.sum(seg, 0)[:, None]
    graph_ref = _moby_ref(pooled_ref, prot_params)
    res_ref = _moby_ref(residue_feature_embedding, res_params)
    assert bool(jnp.allclose(residue_feature, res_ref, rtol=5e-2, atol=5e-2))
    assert bool(jnp.allclose(graph_feature, graph_ref, rtol=1e-1, atol=1e-1))

    print("KERNEL_OK")
</pallas_src>

<mosaic_0001>
module attributes {stable_mosaic.version = 11 : i64} {
  func.func @_stream_pool_stats_kernel(%arg0: i32, %arg1: i32, %arg2: memref<8x1xi32, #tpu.memory_space<vmem>>, %arg3: memref<8x1xi32, #tpu.memory_space<vmem>>, %arg4: memref<32x128xf32, #tpu.memory_space<vmem>>, %arg5: memref<128x128xbf16, #tpu.memory_space<vmem>>, %arg6: memref<1x8x128xf32, #tpu.memory_space<vmem>>, %arg7: memref<1x8x128xf32, #tpu.memory_space<vmem>>) attributes {dimension_semantics = [#tpu.dimension_semantics<parallel>, #tpu.dimension_semantics<arbitrary>], iteration_bounds = array<i64: 4, 2>, scalar_prefetch = 0 : i64, scratch_operands = 0 : i64, tpu.core_type = #tpu.core_type<tc>, window_params = [{pipeline_mode = #tpu.pipeline_mode<synchronous>, transform_indices = @transform_0, window_bounds = array<i64: 8, 1>}, {pipeline_mode = #tpu.pipeline_mode<synchronous>, transform_indices = @transform_1, window_bounds = array<i64: 8, 1>}, {transform_indices = @transform_2, window_bounds = array<i64: 32, 128>}, {transform_indices = @transform_3, window_bounds = array<i64: 128, 128>}, {transform_indices = @transform_4, window_bounds = array<i64: 1, 8, 128>}, {transform_indices = @transform_5, window_bounds = array<i64: 1, 8, 128>}]} {
    %c0 = arith.constant 0 : index
    %c0_0 = arith.constant 0 : index
    %0 = vector.load %arg4[%c0, %c0_0] : memref<32x128xf32, #tpu.memory_space<vmem>>, vector<32x128xf32>
    %c0_i32 = arith.constant 0 : i32
    %1 = arith.cmpi eq, %arg1, %c0_i32 : i32
    %2 = arith.extui %1 : i1 to i32
    %c0_i32_1 = arith.constant 0 : i32
    %3 = arith.cmpi ne, %2, %c0_i32_1 : i32
    scf.if %3 {
      %17 = tpu.iota {dimensions = array<i32: 1>} : vector<8x32xi32>
      %c32_i32 = arith.constant 32 : i32
      %18 = arith.muli %arg0, %c32_i32 : i32
      %19 = vector.broadcast %18 : i32 to vector<8x32xi32>
      %20 = arith.addi %17, %19 : vector<8x32xi32>
      %c0_10 = arith.constant 0 : index
      %c0_11 = arith.constant 0 : index
      %21 = vector.load %arg2[%c0_10, %c0_11] : memref<8x1xi32, #tpu.memory_space<vmem>>, vector<8x1xi32>
      %22 = vector.broadcast %21 : vector<8x1xi32> to vector<8x32xi32>
      %23 = arith.cmpi sge, %20, %22 : vector<8x32xi32>
      %c0_12 = arith.constant 0 : index
      %c0_13 = arith.constant 0 : index
      %24 = vector.load %arg3[%c0_12, %c0_13] : memref<8x1xi32, #tpu.memory_space<vmem>>, vector<8x1xi32>
      %25 = vector.broadcast %24 : vector<8x1xi32> to vector<8x32xi32>
      %26 = arith.cmpi slt, %20, %25 : vector<8x32xi32>
      %27 = arith.andi %23, %26 : vector<8x32xi1>
      %28 = arith.extui %27 : vector<8x32xi1> to vector<8x32xi32>
      %29 = arith.sitofp %28 : vector<8x32xi32> to vector<8x32xf32>
      %cst_14 = arith.constant dense<0.000000e+00> : vector<8x128xf32>
      %30 = tpu.matmul %29, %0, %cst_14 {dimension_numbers = #tpu.dot_dimension_numbers<[1], [0], [0], [1], [0, 0, 1, 1], [], []>} : vector<8x32xf32>, vector<32x128xf32>, vector<8x128xf32> -> vector<8x128xf32>
      %c0_15 = arith.constant 0 : index
      %c0_16 = arith.constant 0 : index
      %c0_17 = arith.constant 0 : index
      %31 = vector.load %arg7[%c0_15, %c0_16, %c0_17] : memref<1x8x128xf32, #tpu.memory_space<vmem>>, vector<1x8x128xf32>
      %32 = vector.shape_cast %31 : vector<1x8x128xf32> to vector<8x128xf32>
      %33 = vector.shape_cast %30 : vector<8x128xf32> to vector<1x8x128xf32>
      tpu.vector_store %arg7[%c0_15, %c0_16, %c0_17], %33 {strides = array<i32>} : memref<1x8x128xf32, #tpu.memory_space<vmem>>, vector<1x8x128xf32>,
    } else {
    }
    %4 = arith.truncf %0 : vector<32x128xf32> to vector<32x128xbf16>
    %c0_2 = arith.constant 0 : index
    %c0_3 = arith.constant 0 : index
    %5 = vector.load %arg5[%c0_2, %c0_3] : memref<128x128xbf16, #tpu.memory_space<vmem>>, vector<128x128xbf16>
    %cst = arith.constant dense<0.000000e+00> : vector<32x128xf32>
    %6 = tpu.matmul %4, %5, %cst {dimension_numbers = #tpu.dot_dimension_numbers<[1], [0], [0], [1], [0, 0, 1, 1], [], []>} : vector<32x128xbf16>, vector<128x128xbf16>, vector<32x128xf32> -> vector<32x128xf32>
    %cst_4 = arith.constant dense<0.000000e+00> : vector<128xf32>
    %7 = vector.multi_reduction <add>, %6, %cst_4 [0] : vector<32x128xf32> to vector<128xf32>
    %8 = vector.shape_cast %7 : vector<128xf32> to vector<1x128xf32>
    %9 = arith.mulf %6, %6 : vector<32x128xf32>
    %cst_5 = arith.constant dense<0.000000e+00> : vector<128xf32>
    %10 = vector.multi_reduction <add>, %9, %cst_5 [0] : vector<32x128xf32> to vector<128xf32>
    %11 = vector.shape_cast %10 : vector<128xf32> to vector<1x128xf32>
    %cst_6 = arith.constant 0.000000e+00 : f32
    %12 = vector.broadcast %cst_6 : f32 to vector<6x128xf32>
    %13 = tpu.concatenate %8, %11, %12 in 0 : vector<1x128xf32>, vector<1x128xf32>, vector<6x128xf32> -> vector<8x128xf32>
    %c0_7 = arith.constant 0 : index
    %c0_8 = arith.constant 0 : index
    %c0_9 = arith.constant 0 : index
    %14 = vector.load %arg6[%c0_7, %c0_8, %c0_9] : memref<1x8x128xf32, #tpu.memory_space<vmem>>, vector<1x8x128xf32>
    %15 = vector.shape_cast %14 : vector<1x8x128xf32> to vector<8x128xf32>
    %16 = vector.shape_cast %13 : vector<8x128xf32> to vector<1x8x128xf32>
    tpu.vector_store %arg6[%c0_7, %c0_8, %c0_9], %16 {strides = array<i32>} : memref<1x8x128xf32, #tpu.memory_space<vmem>>, vector<1x8x128xf32>,
    return
  }
  func.func @transform_0(%arg0: i32, %arg1: i32) -> (i32, i32) {
    %c0_i32 = arith.constant 0 : i32
    %c0_i32_0 = arith.constant 0 : i32
    %c0_i32_1 = arith.constant 0 : i32
    return %c0_i32, %c0_i32_0 : i32, i32
  }
  func.func @transform_1(%arg0: i32, %arg1: i32) -> (i32, i32) {
    %c0_i32 = arith.constant 0 : i32
    %c0_i32_0 = arith.constant 0 : i32
    %c0_i32_1 = arith.constant 0 : i32
    return %c0_i32, %c0_i32_0 : i32, i32
  }
  func.func @transform_2(%arg0: i32, %arg1: i32) -> (i32, i32) {
    %c0_i32 = arith.constant 0 : i32
    %c0_i32_0 = arith.constant 0 : i32
    return %arg0, %c0_i32 : i32, i32
  }
  func.func @transform_3(%arg0: i32, %arg1: i32) -> (i32, i32) {
    %c0_i32 = arith.constant 0 : i32
    %c0_i32_0 = arith.constant 0 : i32
    return %c0_i32, %arg1 : i32, i32
  }
  func.func @transform_4(%arg0: i32, %arg1: i32) -> (i32, i32, i32) {
    %c0_i32 = arith.constant 0 : i32
    %c0_i32_0 = arith.constant 0 : i32
    return %arg0, %c0_i32, %arg1 : i32, i32, i32
  }
  func.func @transform_5(%arg0: i32, %arg1: i32) -> (i32, i32, i32) {
    %c0_i32 = arith.constant 0 : i32
    %c0_i32_0 = arith.constant 0 : i32
    %c0_i32_1 = arith.constant 0 : i32
    return %arg0, %c0_i32, %c0_i32_0 : i32, i32, i32
  }
}

</mosaic_0001>

<llo_original>
// kernel: tpu_custom_call.1
$region0: #{tpu_custom_call.1}
  #allocation0 [shape = 'u32[]', space=smem, size = 0x4, offset = 0x4, fixed_abs, tag = 'smem constant byte address 0x4 - core index']
  #allocation1 [shape = 'u32[144,128]{1,0:T(1,128)}', space=vmem, size = 0x12000, scoped, tag = 'internal scratch']
  %s0 = inlined_call_operand.vmem [shape: s32[8,1], index: 0, kind: input, shape index: {}]
  %s1 = inlined_call_operand.vmem [shape: s32[8,1], index: 1, kind: input, shape index: {}]
  %s2 = inlined_call_operand.hbm [shape: f32[128,128], index: 2, kind: input, shape index: {}]
  %s3 = inlined_call_operand.hbm [shape: bf16[128,256], index: 3, kind: input, shape index: {}]
  %s4 = inlined_call_operand.hbm [shape: f32[4,8,256], index: 4, kind: output, shape index: {0}]
  %s5 = inlined_call_operand.hbm [shape: f32[4,8,128], index: 5, kind: output, shape index: {1}]
  %6 = xla_tuple %s4, %s5
  %s7 = sld [smem:[#allocation0]]
  $region69: #{tpu_custom_call.1} parent=0
    _
  %s9 = ssub.s32 1, %s7
  %s10 = scalar_select 0, %s9, %s7
  $region1: #{tpu_custom_call.1} parent=0
    #allocation2 [shape = 'u8[32768]{0}', space=vmem, size = 0x8000, scoped, tag = 'input window, operand 2']
    #allocation3 [shape = 's32[2]{0}', space=sflag, size = 0x8, scoped, tag = 'scoped memory for tpu_custom_call.1']
    #allocation4 [shape = 's32[2]{0}', space=sflag, size = 0x8, scoped, tag = 'scoped memory for tpu_custom_call.1']
    #allocation5 [shape = 'u8[65536]{0}', space=vmem, size = 0x10000, scoped, tag = 'input window, operand 3']
    #allocation6 [shape = 's32[2]{0}', space=sflag, size = 0x8, scoped, tag = 'scoped memory for tpu_custom_call.1']
    #allocation7 [shape = 'u8[8192]{0}', space=vmem, size = 0x2000, scoped, tag = 'output window, operand 0']
    #allocation8 [shape = 'u8[8192]{0}', space=vmem, size = 0x2000, scoped, tag = 'output window, operand 1']
    #allocation9 [shape = 's32[2]{0}', space=sflag, size = 0x8, scoped, tag = 'scoped memory for tpu_custom_call.1']
    %11 = vsyncpa [#allocation3], 0
    %s12 = scalar_lea.sflag [#allocation3], 1
    %13 = vsyncpa %s12, 0
    %14 = vsyncpa [#allocation6], 0
    %s15 = scalar_lea.sflag [#allocation6], 1
    %16 = vsyncpa %s15, 0
    %17 = vsyncpa [#allocation4], 0
    %s18 = scalar_lea.sflag [#allocation4], 1
    %19 = vsyncpa %s18, 0
    %20 = vsyncpa [#allocation9], 0
    %s21 = scalar_lea.sflag [#allocation9], 1
    %22 = vsyncpa %s21, 0
    loop: start=0, step=1, limit=10
    $region2: #{tpu_custom_call.1} parent=1 // loop_pre_header
      _
    $region3: #{tpu_custom_call.1} parent=1 // loop_header
      %s24 = sphi 0, %s28
      %p25 = scmp.ge.s32.totalorder %s24, 10
      %s31 = sphi 0, %s43
      %s32 = sphi 0, %s39
      %s33 = sphi 0, %s31
      %s34 = sphi 0, %s32
      %s35 = sphi 0, %s33
      %s36 = sphi 0, %s34
      %s44 = sphi 0, %s44
      %s46 = sphi 0, %s44
      %s47 = sphi 0, %s46
      %s61 = sphi 0, %s47
      %s65 = sphi 0, %s65
      %s67 = sphi 0, %s65
      %s68 = sphi 0, %s67
      %s82 = sphi 0, %s68
      %s88 = sphi 0, %s90
      %s91 = sphi 0, %s88
      %s92 = sphi 0, %s91
      %s108 = sphi 0, %s92
      %s114 = sphi 0, %s116
      %s117 = sphi 0, %s114
      %s118 = sphi 0, %s117
      %s134 = sphi 0, %s118
      %s142 = sphi 0, %s144
      %s145 = sphi 0, %s142
      %s146 = sphi 0, %s145
      %s162 = sphi 0, %s146
      %s168 = sphi 0, %s170
      %s171 = sphi 0, %s168
      %s172 = sphi 0, %s171
      %s188 = sphi 0, %s172
    $region4: #{tpu_custom_call.1} parent=1 // loop_header_branch
      %27 = sbr.rel (%p25) target = $region8
    $region5: #{tpu_custom_call.1} parent=1 // loop_body
      %s29 = ssub.s32 %s24, 1
      %s30 = ssub.s32 %s24, 2
      %s37 = sadd.s32 1, %s32
      %p38 = scmp.ge.s32.totalorder %s37, 2
      %s39 = scalar_select %p38, 0, %s37
      %s40 = sadd.s32 1, %s31
      %s41 = scalar_select %p38, %s40, %s31
      %p42 = scmp.ge.s32.totalorder %s41, 4
      %s43 = scalar_select %p42, 0, %s41
      %s45 = sadd.s32 %s44, 1
      %p48 = scmp.eq.s32.totalorder %s24, 7
      %p49 = scmp.ne.s32.totalorder %s44, %s46
      %p50 = scmp.eq.s32.totalorder %s24, 0
      %p51 = por %p49, %p50
      %p52 = scmp.ne.s32.totalorder %s44, %s46
      %p53 = scmp.eq.s32.totalorder %s29, 7
      %p54 = por %p52, %p53
      %p55 = scmp.ne.s32.totalorder %s46, %s47
      %p56 = scmp.eq.s32.totalorder %s29, 0
      %p57 = por %p55, %p56
      %p58 = scmp.ne.s32.totalorder %s46, %s47
      %p59 = scmp.eq.s32.totalorder %s30, 7
      %p60 = por %p58, %p59
      %p62 = scmp.ne.s32.totalorder %s47, %s61
      %p63 = scmp.eq.s32.totalorder %s30, 0
      %p64 = por %p62, %p63
      %s66 = sadd.s32 %s65, 1
      %p69 = scmp.eq.s32.totalorder %s24, 7
      %p70 = scmp.ne.s32.totalorder %s65, %s67
      %p71 = scmp.eq.s32.totalorder %s24, 0
      %p72 = por %p70, %p71
      %p73 = scmp.ne.s32.totalorder %s65, %s67
      %p74 = scmp.eq.s32.totalorder %s29, 7
      %p75 = por %p73, %p74
      %p76 = scmp.ne.s32.totalorder %s67, %s68
      %p77 = scmp.eq.s32.totalorder %s29, 0
      %p78 = por %p76, %p77
      %p79 = scmp.ne.s32.totalorder %s67, %s68
      %p80 = scmp.eq.s32.totalorder %s30, 7
      %p81 = por %p79, %p80
      %p83 = scmp.ne.s32.totalorder %s68, %s82
      %p84 = scmp.eq.s32.totalorder %s30, 0
      %p85 = por %p83, %p84
      %s86 = ssub.s32 %s31, %s43
      %p87 = scmp.eq.s32.totalorder %s86, 0
      %s89 = sadd.s32 %s88, 1
      %s90 = scalar_select %p87, %s88, %s89
      %p93 = pneg %p87
      %p94 = scmp.eq.s32.totalorder %s24, 7
      %p95 = por %p93, %p94
      %p96 = scmp.ne.s32.totalorder %s88, %s91
      %p97 = scmp.eq.s32.totalorder %s24, 0
      %p98 = por %p96, %p97
      %p99 = scmp.ne.s32.totalorder %s88, %s91
      %p100 = scmp.eq.s32.totalorder %s29, 7
      %p101 = por %p99, %p100
      %p102 = scmp.ne.s32.totalorder %s91, %s92
      %p103 = scmp.eq.s32.totalorder %s29, 0
      %p104 = por %p102, %p103
      %p105 = scmp.ne.s32.totalorder %s91, %s92
      %p106 = scmp.eq.s32.totalorder %s30, 7
      %p107 = por %p105, %p106
      %p109 = scmp.ne.s32.totalorder %s92, %s108
      %p110 = scmp.eq.s32.totalorder %s30, 0
      %p111 = por %p109, %p110
      %s112 = ssub.s32 %s32, %s39
      %p113 = scmp.eq.s32.totalorder %s112, 0
      %s115 = sadd.s32 %s114, 1
      %s116 = scalar_select %p113, %s114, %s115
      %p119 = pneg %p113
      %p120 = scmp.eq.s32.totalorder %s24, 7
      %p121 = por %p119, %p120
      %p122 = scmp.ne.s32.totalorder %s114, %s117
      %p123 = scmp.eq.s32.totalorder %s24, 0
      %p124 = por %p122, %p123
      %p125 = scmp.ne.s32.totalorder %s114, %s117
      %p126 = scmp.eq.s32.totalorder %s29, 7
      %p127 = por %p125, %p126
      %p128 = scmp.ne.s32.totalorder %s117, %s118
      %p129 = scmp.eq.s32.totalorder %s29, 0
      %p130 = por %p128, %p129
      %p131 = scmp.ne.s32.totalorder %s117, %s118
      %p132 = scmp.eq.s32.totalorder %s30, 7
      %p133 = por %p131, %p132
      %p135 = scmp.ne.s32.totalorder %s118, %s134
      %p136 = scmp.eq.s32.totalorder %s30, 0
      %p137 = por %p135, %p136
      %s138 = ssub.s32 %s31, %s43
      %s139 = ssub.s32 %s32, %s39
      %s140 = sor.u32 %s138, %s139
      %p141 = scmp.eq.s32.totalorder %s140, 0
      %s143 = sadd.s32 %s142, 1
      %s144 = scalar_select %p141, %s142, %s143
      %p147 = pneg %p141
      %p148 = scmp.eq.s32.totalorder %s24, 7
      %p149 = por %p147, %p148
      %p150 = scmp.ne.s32.totalorder %s142, %s145
      %p151 = scmp.eq.s32.totalorder %s24, 0
      %p152 = por %p150, %p151
      %p153 = scmp.ne.s32.totalorder %s142, %s145
      %p154 = scmp.eq.s32.totalorder %s29, 7
      %p155 = por %p153, %p154
      %p156 = scmp.ne.s32.totalorder %s145, %s146
      %p157 = scmp.eq.s32.totalorder %s29, 0
      %p158 = por %p156, %p157
      %p159 = scmp.ne.s32.totalorder %s145, %s146
      %p160 = scmp.eq.s32.totalorder %s30, 7
      %p161 = por %p159, %p160
      %p163 = scmp.ne.s32.totalorder %s146, %s162
      %p164 = scmp.eq.s32.totalorder %s30, 0
      %p165 = por %p163, %p164
      %s166 = ssub.s32 %s31, %s43
      %p167 = scmp.eq.s32.totalorder %s166, 0
      %s169 = sadd.s32 %s168, 1
      %s170 = scalar_select %p167, %s168, %s169
      %p173 = pneg %p167
      %p174 = scmp.eq.s32.totalorder %s24, 7
      %p175 = por %p173, %p174
      %p176 = scmp.ne.s32.totalorder %s168, %s171
      %p177 = scmp.eq.s32.totalorder %s24, 0
      %p178 = por %p176, %p177
      %p179 = scmp.ne.s32.totalorder %s168, %s171
      %p180 = scmp.eq.s32.totalorder %s29, 7
      %p181 = por %p179, %p180
      %p182 = scmp.ne.s32.totalorder %s171, %s172
      %p183 = scmp.eq.s32.totalorder %s29, 0
      %p184 = por %p182, %p183
      %p185 = scmp.ne.s32.totalorder %s171, %s172
      %p186 = scmp.eq.s32.totalorder %s30, 7
      %p187 = por %p185, %p186
      %p189 = scmp.ne.s32.totalorder %s172, %s188
      %p190 = scmp.eq.s32.totalorder %s30, 0
      %p191 = por %p189, %p190
      %p192 = scmp.le.s32.totalorder 1, %s24
      %p193 = scmp.lt.s32.totalorder %s24, 9
      %p194 = pnand %p192, %p193
      %p195 = pneg %p194
      // Predicated region
      $region9: #{tpu_custom_call.1} parent=5 // pred_check
        _
      $region10: #{tpu_custom_call.1} parent=5 // pred_check_branch
        %197 = sbr.rel (%p194) target = $region12
      $region11: #{tpu_custom_call.1} parent=5 // pred_region
        %s198 = ssub.s32 %s24, 1
        // Predicated region
        $region13: #{tpu_custom_call.1} parent=11 // pred_check
          %p199 = pneg %p57
        $region14: #{tpu_custom_call.1} parent=11 // pred_check_branch
          %201 = sbr.rel (%p199) target = $region16
        $region15: #{tpu_custom_call.1} parent=11 // pred_region
          _
        $region16: #{tpu_custom_call.1} parent=11 // pred_fallthru
          _
        // Predicated region
        $region17: #{tpu_custom_call.1} parent=11 // pred_check
          %p202 = pneg %p78
        $region18: #{tpu_custom_call.1} parent=11 // pred_check_branch
          %204 = sbr.rel (%p202) target = $region20
        $region19: #{tpu_custom_call.1} parent=11 // pred_region
          _
        $region20: #{tpu_custom_call.1} parent=11 // pred_fallthru
          _
      $region12: #{tpu_custom_call.1} parent=5 // pred_fallthru
        _
      %p205 = scmp.lt.s32.totalorder %s24, 8
      // Predicated region
      $region21: #{tpu_custom_call.1} parent=5 // pred_check
        %p206 = pneg %p205
      $region22: #{tpu_custom_call.1} parent=5 // pred_check_branch
        %208 = sbr.rel (%p206) target = $region24
      $region23: #{tpu_custom_call.1} parent=5 // pred_region
        // Predicated region
        $region25: #{tpu_custom_call.1} parent=23 // pred_check
          %p209 = pneg %p98
        $region26: #{tpu_custom_call.1} parent=23 // pred_check_branch
          %211 = sbr.rel (%p209) target = $region28
        $region27: #{tpu_custom_call.1} parent=23 // pred_region
          %s212 = sand.u32 %s88, 1
          %s213 = scalar_lea.sflag [#allocation3], %s212
          %s214 = sand.u32 %s88, 1
          %s215 = smul.addr %s214, 32
          %s216 = scalar_lea.vmem [#allocation2], %s215
          %s217 = smul.u32 4, %s31
          %s219 = ssub.s32 512, 512
          %220 = vsyncadd %s213, %s219
          %s221 = smul.addr %s217, 128
          %s222 = scalar_lea.hbm %s2, %s221
          %s223 = sshll.u32 %s216, 4
          %s224 = int_to_ptr.vmem [resolvable:$true] %s223
          %229 = dma.hbm_to_vmem [thread:$0]  %s222, 512, %s224, %s213, 128, 128, 8
        $region28: #{tpu_custom_call.1} parent=23 // pred_fallthru
          _
        // Predicated region
        $region29: #{tpu_custom_call.1} parent=23 // pred_check
          %p230 = pneg %p124
        $region30: #{tpu_custom_call.1} parent=23 // pred_check_branch
          %232 = sbr.rel (%p230) target = $region32
        $region31: #{tpu_custom_call.1} parent=23 // pred_region
          %s233 = sand.u32 %s114, 1
          %s234 = scalar_lea.sflag [#allocation6], %s233
          %s235 = sand.u32 %s114, 1
          %s236 = smul.addr %s235, 64
          %s237 = scalar_lea.vmem [#allocation5], %s236
          %s239 = ssub.s32 1024, 1024
          %240 = vsyncadd %s234, %s239
          %s241 = smul.addr %s32, 64
          %s242 = scalar_lea.hbm %s3, %s241
          %s243 = sshll.u32 %s237, 4
          %s244 = int_to_ptr.vmem [resolvable:$true] %s243
          %249 = dma.hbm_to_vmem [thread:$0]  %s242, 1024, %s244, %s234, 128, 64, 4
        $region32: #{tpu_custom_call.1} parent=23 // pred_fallthru
          _
      $region24: #{tpu_custom_call.1} parent=5 // pred_fallthru
        _
      %p250 = scmp.le.s32.totalorder 1, %s24
      %p251 = scmp.lt.s32.totalorder %s24, 9
      %p252 = pnand %p250, %p251
      %p253 = pneg %p252
      // Predicated region
      $region33: #{tpu_custom_call.1} parent=5 // pred_check
        _
      $region34: #{tpu_custom_call.1} parent=5 // pred_check_branch
        %255 = sbr.rel (%p252) target = $region36
      $region35: #{tpu_custom_call.1} parent=5 // pred_region
        %s256 = ssub.s32 %s24, 1
        %s257 = sand.u32 %s91, 1
        %s258 = scalar_lea.sflag [#allocation3], %s257
        %s259 = sand.u32 %s91, 1
        %s260 = smul.addr %s259, 32
        %s261 = scalar_lea.vmem [#allocation2], %s260
        // Predicated region
        $region37: #{tpu_custom_call.1} parent=35 // pred_check
          %p262 = pneg %p104
        $region38: #{tpu_custom_call.1} parent=35 // pred_check_branch
          %264 = sbr.rel (%p262) target = $region40
        $region39: #{tpu_custom_call.1} parent=35 // pred_region
          %265 = dma.done %s258, 512
        $region40: #{tpu_custom_call.1} parent=35 // pred_fallthru
          _
        %s266 = sand.u32 %s117, 1
        %s267 = scalar_lea.sflag [#allocation6], %s266
        %s268 = sand.u32 %s117, 1
        %s269 = smul.addr %s268, 64
        %s270 = scalar_lea.vmem [#allocation5], %s269
        // Predicated region
        $region41: #{tpu_custom_call.1} parent=35 // pred_check
          %p271 = pneg %p130
        $region42: #{tpu_custom_call.1} parent=35 // pred_check_branch
          %273 = sbr.rel (%p271) target = $region44
        $region43: #{tpu_custom_call.1} parent=35 // pred_region
          %274 = dma.done %s267, 1024
        $region44: #{tpu_custom_call.1} parent=35 // pred_fallthru
          _
        %p275 = pneg %p57
        %p276 = pneg %p54
        %p277 = pneg %p78
        %p278 = pneg %p75
        %s279 = sand.u32 %s91, 1
        %s280 = scalar_lea.sflag [#allocation3], %s279
        %s281 = sand.u32 %s91, 1
        %s282 = smul.addr %s281, 32
        %s283 = scalar_lea.vmem [#allocation2], %s282
        %p284 = pneg %p104
        %p285 = pneg %p101
        %s286 = sand.u32 %s117, 1
        %s287 = scalar_lea.sflag [#allocation6], %s286
        %s288 = sand.u32 %s117, 1
        %s289 = smul.addr %s288, 64
        %s290 = scalar_lea.vmem [#allocation5], %s289
        %p291 = pneg %p130
        %p292 = pneg %p127
        %p293 = pneg %p158
        %p294 = pneg %p155
        %s295 = sand.u32 %s145, 1
        %s296 = scalar_lea.sflag [#allocation4], %s295
        %s297 = sand.u32 %s145, 1
        %s298 = smul.addr %s297, 8
        %s299 = scalar_lea.vmem [#allocation7], %s298
        %p300 = pneg %p184
        %p301 = pneg %p181
        %s302 = sand.u32 %s171, 1
        %s303 = scalar_lea.sflag [#allocation9], %s302
        %s304 = sand.u32 %s171, 1
        %s305 = smul.addr %s304, 8
        %s306 = scalar_lea.vmem [#allocation8], %s305
        %s307 = smul.u32 4, %s33
        %v309 = vld [vmem:[%s261] sm:$0xff]
        %v310 = vld [vmem:[%s261 + $0x8] sm:$0xff]
        %v311 = vld [vmem:[%s261 + $0x10] sm:$0xff]
        %v312 = vld [vmem:[%s261 + $0x18] sm:$0xff]
        %p313 = scmp.eq.s32.totalorder %s34, 0
        // Predicated region
        $region45: #{tpu_custom_call.1} parent=35 // pred_check
          %p314 = pneg %p313
        $region46: #{tpu_custom_call.1} parent=35 // pred_check_branch
          %316 = sbr.rel (%p314) target = $region48
        $region47: #{tpu_custom_call.1} parent=35 // pred_region
          %v317 = vlaneseq
          %v318 = vand.u32 %v317, 127
          %s319 = smul.u32 %s33, 32
          %v320 = vstv %s319
          %v321 = vadd.s32 %v318, %v320
          %v322 = vld [vmem:[%s0] sm:$0xff]
          %323 = vset.pattern.permute.xlu0 0
          %324 = vperm.xlu0 %323, %v322
          %v325 = vpop.permute.xlu0 %324
          %vm326 = vcmp.ge.s32.totalorder %v321, %v325
          %v327 = vld [vmem:[%s1] sm:$0xff]
          %328 = vset.pattern.permute.xlu0 0
          %329 = vperm.xlu0 %328, %v327
          %v330 = vpop.permute.xlu0 %329
          %vm331 = vcmp.lt.s32.totalorder %v321, %v330
          %vm332 = vmand %vm326, %vm331
          %v333 = vsel %vm332, 1, 0
          %v334 = vcvt.s32.f32 %v333
          %vm335 = vcmask 261120
          %v337 = vsel %vm335, %v334, 0
          %339 = vmatprep.subr.mxu0 0.0
          %340 = vmatpush1.msra.mxu0 0.0
          %341 = vmatprep.subr.mxu0 0.0
          %342 = vmatpush1.msra.mxu0 0.0
          %343 = vmatprep.subr.mxu0 0.0
          %344 = vmatpush1.msra.mxu0 0.0
          %345 = vmatprep.subr.mxu0 0.0
          %346 = vmatpush1.msra.mxu0 0.0
          %347 = vmatprep.subr.mxu0 0.0
          %348 = vmatpush1.msra.mxu0 0.0
          %349 = vmatprep.subr.mxu0 0.0
          %350 = vmatpush1.msra.mxu0 0.0
          %351 = vmatprep.subr.mxu0 0.0
          %352 = vmatpush1.msra.mxu0 0.0
          %353 = vmatprep.subr.mxu0 0.0
          %354 = vmatpush1.msra.mxu0 0.0
          %355 = vmatprep.subr.mxu0 0.0
          %356 = vmatpush1.msra.mxu0 0.0
          %357 = vmatprep.subr.mxu0 0.0
          %358 = vmatpush1.msra.mxu0 0.0
          %359 = vmatprep.subr.mxu0 0.0
          %360 = vmatpush1.msra.mxu0 0.0
          %361 = vmatprep.subr.mxu0 0.0
          %362 = vmatpush1.msra.mxu0 0.0
          %363 = vmatprep.subr.mxu0 0.0
          %364 = vmatpush1.msra.mxu0 %v312
          %365 = vmatprep.subr.mxu0 0.0
          %366 = vmatpush1.msra.mxu0 %v311
          %367 = vmatprep.subr.mxu0 0.0
          %368 = vmatpush1.msra.mxu0 %v310
          %369 = vmatprep.subr.mxu0 0.0
          %370 = vmatpush1.msra.mxu0 %v309
          %371 = vmatprep.subr.mxu0 0.0
          %372 = vmatpush2.msra.mxu0 0.0
          %373 = vmatprep.subr.mxu0 0.0
          %374 = vmatpush2.msra.mxu0 0.0
          %375 = vmatprep.subr.mxu0 0.0
          %376 = vmatpush2.msra.mxu0 0.0
          %377 = vmatprep.subr.mxu0 0.0
          %378 = vmatpush2.msra.mxu0 0.0
          %379 = vmatprep.subr.mxu0 0.0
          %380 = vmatpush2.msra.mxu0 0.0
          %381 = vmatprep.subr.mxu0 0.0
          %382 = vmatpush2.msra.mxu0 0.0
          %383 = vmatprep.subr.mxu0 0.0
          %384 = vmatpush2.msra.mxu0 0.0
          %385 = vmatprep.subr.mxu0 0.0
          %386 = vmatpush2.msra.mxu0 0.0
          %387 = vmatprep.subr.mxu0 0.0
          %388 = vmatpush2.msra.mxu0 0.0
          %389 = vmatprep.subr.mxu0 0.0
          %390 = vmatpush2.msra.mxu0 0.0
          %391 = vmatprep.subr.mxu0 0.0
          %392 = vmatpush2.msra.mxu0 0.0
          %393 = vmatprep.subr.mxu0 0.0
          %394 = vmatpush2.msra.mxu0 0.0
          %395 = vmatprep.subr.mxu0 0.0
          %396 = vmatpush2.msra.mxu0 0.0
          %397 = vmatprep.subr.mxu0 0.0
          %398 = vmatpush2.msra.mxu0 0.0
          %399 = vmatprep.subr.mxu0 0.0
          %400 = vmatpush2.msra.mxu0 0.0
          %401 = vmatprep.subr.mxu0 0.0
          %402 = vmatpush2.msra.mxu0 0.0
          %403 = vmatprep.mubr.f32.mxu0 0.0
          %404 = vmatmul.mubr.f32.gmra.mxu0 %v337
          %v405 = vpop.f32.mrf.mxu0
          %v406 = vadd.f32 0.0, %v405
          %v407 = vpop.f32.mrf.mxu0
          %408 = vdwg.mxu0
          %409 = vst [vmem:[%s306] sm:$0xff] %v406
        $region48: #{tpu_custom_call.1} parent=35 // pred_fallthru
          _
        %v410 = vpack.c.bf16 %v310, %v309
        %v411 = vpack.c.bf16 %v312, %v311
        %v412 = vld [vmem:[%s270] sm:$0xf]
        %v413 = vld [vmem:[%s270 + $0x4] sm:$0xf]
        %v414 = vld [vmem:[%s270 + $0x8] sm:$0xf]
        %v415 = vld [vmem:[%s270 + $0xc] sm:$0xf]
        %v416 = vld [vmem:[%s270 + $0x10] sm:$0xf]
        %v417 = vld [vmem:[%s270 + $0x14] sm:$0xf]
        %v418 = vld [vmem:[%s270 + $0x18] sm:$0xf]
        %v419 = vld [vmem:[%s270 + $0x1c] sm:$0xf]
        %v420 = vld [vmem:[%s270 + $0x20] sm:$0xf]
        %v421 = vld [vmem:[%s270 + $0x24] sm:$0xf]
        %v422 = vld [vmem:[%s270 + $0x28] sm:$0xf]
        %v423 = vld [vmem:[%s270 + $0x2c] sm:$0xf]
        %v424 = vld [vmem:[%s270 + $0x30] sm:$0xf]
        %v425 = vld [vmem:[%s270 + $0x34] sm:$0xf]
        %v426 = vld [vmem:[%s270 + $0x38] sm:$0xf]
        %v427 = vld [vmem:[%s270 + $0x3c] sm:$0xf]
        %v444 = vunpack.c.l.b16 %v412
        %v445 = vunpack.c.l.b16 %v413
        %v446 = vunpack.c.l.b16 %v414
        %v447 = vunpack.c.l.b16 %v415
        %v448 = vunpack.c.l.b16 %v416
        %v449 = vunpack.c.l.b16 %v417
        %v450 = vunpack.c.l.b16 %v418
        %v451 = vunpack.c.l.b16 %v419
        %v452 = vunpack.c.l.b16 %v420
        %v453 = vunpack.c.l.b16 %v421
        %v454 = vunpack.c.l.b16 %v422
        %v455 = vunpack.c.l.b16 %v423
        %v456 = vunpack.c.l.b16 %v424
        %v457 = vunpack.c.l.b16 %v425
        %v458 = vunpack.c.l.b16 %v426
        %v459 = vunpack.c.l.b16 %v427
        %v460 = vpack.c.b16 %v445, %v444
        %v461 = vpack.c.b16 %v447, %v446
        %v462 = vpack.c.b16 %v449, %v448
        %v463 = vpack.c.b16 %v451, %v450
        %v464 = vpack.c.b16 %v453, %v452
        %v465 = vpack.c.b16 %v455, %v454
        %v466 = vpack.c.b16 %v457, %v456
        %v467 = vpack.c.b16 %v459, %v458
        %476 = vmatprep.subr.bf16.mxu0 0
        %477 = vmatpush1.bf16.msra.mxu0 %v467
        %478 = vmatprep.subr.bf16.mxu0 0
        %479 = vmatpush1.bf16.msra.mxu0 %v466
        %480 = vmatprep.subr.bf16.mxu0 0
        %481 = vmatpush1.bf16.msra.mxu0 %v465
        %482 = vmatprep.subr.bf16.mxu0 0
        %483 = vmatpush1.bf16.msra.mxu0 %v464
        %484 = vmatprep.subr.bf16.mxu0 0
        %485 = vmatpush1.bf16.msra.mxu0 %v463
        %486 = vmatprep.subr.bf16.mxu0 0
        %487 = vmatpush1.bf16.msra.mxu0 %v462
        %488 = vmatprep.subr.bf16.mxu0 0
        %489 = vmatpush1.bf16.msra.mxu0 %v461
        %490 = vmatprep.subr.bf16.mxu0 0
        %491 = vmatpush1.bf16.msra.mxu0 %v460
        %492 = vmatprep.subr.bf16.mxu0 0
        %493 = vmatpush2.bf16.msra.mxu0 0
        %494 = vmatprep.subr.bf16.mxu0 0
        %495 = vmatpush2.bf16.msra.mxu0 0
        %496 = vmatprep.subr.bf16.mxu0 0
        %497 = vmatpush2.bf16.msra.mxu0 0
        %498 = vmatprep.subr.bf16.mxu0 0
        %499 = vmatpush2.bf16.msra.mxu0 0
        %500 = vmatprep.subr.bf16.mxu0 0
        %501 = vmatpush2.bf16.msra.mxu0 0
        %502 = vmatprep.subr.bf16.mxu0 0
        %503 = vmatpush2.bf16.msra.mxu0 0
        %504 = vmatprep.subr.bf16.mxu0 0
        %505 = vmatpush2.bf16.msra.mxu0 0
        %506 = vmatprep.subr.bf16.mxu0 0
        %507 = vmatpush2.bf16.msra.mxu0 0
        %508 = vmatprep.mubr.bf16.mxu0 0
        %509 = vmatmul.mubr.bf16.gmra.mxu0 %v410
        %v510 = vpop.f32.mrf.mxu0
        %v511 = vadd.f32 0.0, %v510
        %v512 = vpop.f32.mrf.mxu0
        %v513 = vpop.f32.mrf.mxu0
        %v514 = vadd.f32 0.0, %v513
        %v515 = vpop.f32.mrf.mxu0
        %516 = vmatprep.mubr.bf16.mxu0 0
        %517 = vmatmul.mubr.bf16.gmra.mxu0 %v411
        %v518 = vpop.f32.mrf.mxu0
        %v519 = vadd.f32 0.0, %v518
        %v520 = vpop.f32.mrf.mxu0
        %v521 = vpop.f32.mrf.mxu0
        %v522 = vadd.f32 0.0, %v521
        %v523 = vpop.f32.mrf.mxu0
        %524 = vdwg.mxu0
        %v525 = vadd.f32 %v511, %v514
        %v526 = vadd.f32 %v525, %v519
        %v527 = vadd.f32 %v526, %v522
        %v528 = vrot.slane %v527, 4
        %v529 = vadd.f32 %v527, %v528
        %v530 = vrot.slane %v529, 2
        %v531 = vadd.f32 %v529, %v530
        %v532 = vrot.slane %v531, 1
        %v533 = vadd.f32 %v531, %v532
        %v534 = vmul.f32 %v511, %v511
        %v535 = vmul.f32 %v514, %v514
        %v536 = vmul.f32 %v519, %v519
        %v537 = vmul.f32 %v522, %v522
        %v538 = vadd.f32 %v534, %v535
        %v539 = vadd.f32 %v538, %v536
        %v540 = vadd.f32 %v539, %v537
        %v541 = vrot.slane %v540, 4
        %v542 = vadd.f32 %v540, %v541
        %v543 = vrot.slane %v542, 2
        %v544 = vadd.f32 %v542, %v543
        %v545 = vrot.slane %v544, 1
        %v546 = vadd.f32 %v544, %v545
        %vm547 = vcmask 1040384
        %v548 = vsel %vm547, %v533, %v546
        %vm549 = vcmask 1041408
        %v550 = vsel %vm549, %v548, 0.0
        %551 = vst [vmem:[%s299] sm:$0xff] %v550
        %s552 = sand.u32 %s145, 1
        %s553 = scalar_lea.sflag [#allocation4], %s552
        %s554 = sand.u32 %s145, 1
        %s555 = smul.addr %s554, 8
        %s556 = scalar_lea.vmem [#allocation7], %s555
        %s557 = sand.u32 %s171, 1
        %s558 = scalar_lea.sflag [#allocation9], %s557
        %s559 = sand.u32 %s171, 1
        %s560 = smul.addr %s559, 8
        %s561 = scalar_lea.vmem [#allocation8], %s560
        // Predicated region
        $region49: #{tpu_custom_call.1} parent=35 // pred_check
          %p562 = pneg %p155
        $region50: #{tpu_custom_call.1} parent=35 // pred_check_branch
          %564 = sbr.rel (%p562) target = $region52
        $region51: #{tpu_custom_call.1} parent=35 // pred_region
          %s566 = ssub.s32 128, 128
          %567 = vsyncadd %s553, %s566
          %s568 = smul.addr %s33, 2
          %s569 = sadd.s32 %s34, %s568
          %s570 = smul.addr %s569, 128
          %s571 = scalar_lea.hbm %s4, %s570
          %s573 = sshll.u32 %s556, 4
          %s574 = int_to_ptr.vmem [resolvable:$true] %s573
          %576 = dma.vmem_to_hbm [thread:$0]  %s574, 128, %s571, %s553
        $region52: #{tpu_custom_call.1} parent=35 // pred_fallthru
          _
        // Predicated region
        $region53: #{tpu_custom_call.1} parent=35 // pred_check
          %p577 = pneg %p181
        $region54: #{tpu_custom_call.1} parent=35 // pred_check_branch
          %579 = sbr.rel (%p577) target = $region56
        $region55: #{tpu_custom_call.1} parent=35 // pred_region
          %s581 = ssub.s32 128, 128
          %582 = vsyncadd %s558, %s581
          %s583 = smul.addr %s33, 128
          %s584 = scalar_lea.hbm %s5, %s583
          %s586 = sshll.u32 %s561, 4
          %s587 = int_to_ptr.vmem [resolvable:$true] %s586
          %589 = dma.vmem_to_hbm [thread:$0]  %s587, 128, %s584, %s558
        $region56: #{tpu_custom_call.1} parent=35 // pred_fallthru
          _
      $region36: #{tpu_custom_call.1} parent=5 // pred_fallthru
        _
      %p590 = scmp.le.s32.totalorder 2, %s24
      // Predicated region
      $region57: #{tpu_custom_call.1} parent=5 // pred_check
        %p591 = pneg %p590
      $region58: #{tpu_custom_call.1} parent=5 // pred_check_branch
        %593 = sbr.rel (%p591) target = $region60
      $region59: #{tpu_custom_call.1} parent=5 // pred_region
        %s594 = ssub.s32 %s24, 2
        // Predicated region
        $region61: #{tpu_custom_call.1} parent=59 // pred_check
          %p595 = pneg %p161
        $region62: #{tpu_custom_call.1} parent=59 // pred_check_branch
          %597 = sbr.rel (%p595) target = $region64
        $region63: #{tpu_custom_call.1} parent=59 // pred_region
          %s598 = sand.u32 %s146, 1
          %s599 = scalar_lea.sflag [#allocation4], %s598
          %s600 = sand.u32 %s146, 1
          %s601 = smul.addr %s600, 8
          %s602 = scalar_lea.vmem [#allocation7], %s601
          %603 = dma.done %s599, 128
        $region64: #{tpu_custom_call.1} parent=59 // pred_fallthru
          _
        // Predicated region
        $region65: #{tpu_custom_call.1} parent=59 // pred_check
          %p604 = pneg %p187
        $region66: #{tpu_custom_call.1} parent=59 // pred_check_branch
          %606 = sbr.rel (%p604) target = $region68
        $region67: #{tpu_custom_call.1} parent=59 // pred_region
          %s607 = sand.u32 %s172, 1
          %s608 = scalar_lea.sflag [#allocation9], %s607
          %s609 = sand.u32 %s172, 1
          %s610 = smul.addr %s609, 8
          %s611 = scalar_lea.vmem [#allocation8], %s610
          %612 = dma.done %s608, 128
        $region68: #{tpu_custom_call.1} parent=59 // pred_fallthru
          _
      $region60: #{tpu_custom_call.1} parent=5 // pred_fallthru
        _
    $region6: #{tpu_custom_call.1} parent=1 // loop_footer
      %s28 = sadd.s32 1, %s24
    $region7: #{tpu_custom_call.1} parent=1 // loop_footer_branch
      %23 = sbr.rel target = $region3
    $region8: #{tpu_custom_call.1} parent=1 // loop_exit
      _
    %613 = vsyncpa [#allocation3], 1
    %s614 = scalar_lea.sflag [#allocation3], 1
    %615 = vsyncpa %s614, 1
    %616 = vsyncpa [#allocation6], 1
    %s617 = scalar_lea.sflag [#allocation6], 1
    %618 = vsyncpa %s617, 1
    %619 = vsyncpa [#allocation4], 1
    %s620 = scalar_lea.sflag [#allocation4], 1
    %621 = vsyncpa %s620, 1
    %622 = vsyncpa [#allocation9], 1
    %s623 = scalar_lea.sflag [#allocation9], 1
    %624 = vsyncpa %s623, 1

</llo_original>
